<compile_context>
chip_gen: v7x
topology: tpu7x:2x2x1
jax: 0.10.0
libtpu: 0.0.40
codegen_flags: <defaults>
</compile_context>

<pallas_src>
import functools

import jax
import jax.numpy as jnp
from jax.experimental import pallas as pl
from jax.experimental.pallas import tpu as pltpu


def _aspp_pooling_kernel(x_ref, wt_ref, bias_ref, o_ref, acc_ref, *, hw, needs_mask):
    k = pl.program_id(1)

    @pl.when(k == 0)
    def _init():
        acc_ref[...] = jnp.zeros_like(acc_ref)

    x = x_ref[...].astype(jnp.float32)                          # (1, C_in, THW)
    if needs_mask:
        thw = x.shape[-1]
        lane = jax.lax.broadcasted_iota(jnp.int32, x.shape, dimension=2)
        x = jnp.where(k * thw + lane < hw, x, 0.0)              # zero padded tail
    acc_ref[...] += x                                           # VPU adds, hidden under DMA

    @pl.when(k == pl.num_programs(1) - 1)
    def _epilogue():
        # One cross-lane reduce + global-average scaling (1/HW is a constant).
        pooled = jnp.sum(acc_ref[...], axis=-1) * (1.0 / hw)    # (1, C_in)
        # 1x1 conv with BN scale pre-folded into the weight: tiny MXU matmul.
        y = jnp.dot(pooled, wt_ref[...], preferred_element_type=jnp.float32)
        y = jnp.maximum(y + bias_ref[...], 0.0)                 # BN shift + ReLU
        o_ref[...] = y.reshape(o_ref.shape).astype(o_ref.dtype)


def _pick_hw_tile(hw, c_in, budget_bytes=16 * 1024 * 1024, max_tile=4096):
    # Bytes held in VMEM per HW lane: 2 double-buffered input tiles + f32 acc.
    per_lane = max(c_in * 4 * 3, 1)
    t = min(budget_bytes // per_lane, max_tile, hw)
    if t >= hw:
        return hw                                               # single tile covers HW
    return max(128, (t // 128) * 128)                           # lane-aligned tiling


def aspp_pooling(x, weight, gamma, beta, running_mean, running_var,
                 eps=1e-5, hw_tile=None):
    """x: (N, C_in, H, W) float32; weight: (C_out, C_in) from the 1x1 conv."""
    N, C_in, H, W = x.shape
    C_out = weight.shape[0]
    HW = H * W

    thw = _pick_hw_tile(HW, C_in) if hw_tile is None else hw_tile
    assert thw == HW or thw % 128 == 0, "hw tile must equal HW or be lane-aligned"
    n_hw = pl.cdiv(HW, thw)
    needs_mask = (HW % thw) != 0

    x_flat = x.reshape(N, C_in, HW)                   # free: H, W already contiguous

    # TODO(synk): BatchNorm implemented in inference mode (running stats);
    # PyTorch train-mode batch statistics over the pooled (N,1,1) activations
    # are not reproduced here.
    inv_std = 1.0 / jnp.sqrt(running_var.astype(jnp.float32) + eps)
    scale = gamma.astype(jnp.float32) * inv_std                           # (C_out,)
    wt = (weight.astype(jnp.float32) * scale[:, None]).T                  # (C_in, C_out), BN-folded
    bias = (beta.astype(jnp.float32)
            - running_mean.astype(jnp.float32) * scale).reshape(1, C_out)

    kernel = functools.partial(_aspp_pooling_kernel, hw=HW, needs_mask=needs_mask)

    cost = pl.CostEstimate(
        flops=N * C_in * HW + 2 * N * C_in * C_out + 2 * N * C_out,
        transcendentals=0,
        bytes_accessed=4 * (N * C_in * HW + C_in * C_out + C_out + N * C_out),
    )

    out_small = pl.pallas_call(
        kernel,
        out_shape=jax.ShapeDtypeStruct((N, 1, C_out), x.dtype),
        grid=(N, n_hw),
        in_specs=[
            pl.BlockSpec((1, C_in, thw), lambda n, k: (n, 0, k)),
            pl.BlockSpec((C_in, C_out), lambda n, k: (0, 0)),
            pl.BlockSpec((1, C_out), lambda n, k: (0, 0)),
        ],
        out_specs=pl.BlockSpec((1, 1, C_out), lambda n, k: (n, 0, 0)),
        scratch_shapes=[pltpu.VMEM((1, C_in, thw), jnp.float32)],
        compiler_params=pltpu.CompilerParams(
            dimension_semantics=("parallel", "arbitrary"),
            vmem_limit_bytes=32 * 1024 * 1024,
        ),
        cost_estimate=cost,
    )(x_flat, wt, bias)

    out_small = out_small.reshape(N, C_out)
    # Bilinear upsample from 1x1 with align_corners=True is an exact broadcast;
    # delegate the (N, C_out, H, W) write-out to XLA (lane-dense, roofline BW).
    return jnp.broadcast_to(out_small[:, :, None, None], (N, C_out, H, W))


def _reference(x, weight, gamma, beta, running_mean, running_var, eps=1e-5):
    pooled = jnp.mean(x, axis=(2, 3))                       # (N, C_in)
    y = pooled @ weight.T                                   # (N, C_out)
    y = (y - running_mean) / jnp.sqrt(running_var + eps) * gamma + beta
    y = jnp.maximum(y, 0.0)
    N, C_out = y.shape
    H, W = x.shape[-2:]
    return jnp.broadcast_to(y[:, :, None, None], (N, C_out, H, W))


if __name__ == "__main__":
    key = jax.random.PRNGKey(0)
    k_x, k_w, k_g, k_b, k_m, k_v, k_x2 = jax.random.split(key, 7)

    N, C_in, C_out = 2, 4, 8

    weight = jax.random.normal(k_w, (C_out, C_in), dtype=jnp.float32) * 0.5
    gamma = 1.0 + 0.1 * jax.random.normal(k_g, (C_out,), dtype=jnp.float32)
    beta = 0.1 * jax.random.normal(k_b, (C_out,), dtype=jnp.float32)
    running_mean = 0.1 * jax.random.normal(k_m, (C_out,), dtype=jnp.float32)
    running_var = jnp.abs(1.0 + 0.1 * jax.random.normal(k_v, (C_out,), dtype=jnp.float32))

    # Case 1: HW = 256 with 128-lane tiles -> 2 full tiles, no tail masking.
    x1 = jax.random.normal(k_x, (N, C_in, 16, 16), dtype=jnp.float32)
    out1 = jax.block_until_ready(
        aspp_pooling(x1, weight, gamma, beta, running_mean, running_var, hw_tile=128))
    ref1 = _reference(x1, weight, gamma, beta, running_mean, running_var)
    assert out1.shape == ref1.shape, (out1.shape, ref1.shape)
    assert jnp.allclose(out1, ref1, atol=1e-5, rtol=1e-5), "case 1 mismatch vs reference"

    # Case 2: ragged HW = 324 (3 tiles, last tile has 68 valid lanes) -> masked tail.
    x2 = jax.random.normal(k_x2, (N, C_in, 18, 18), dtype=jnp.float32)
    out2 = jax.block_until_ready(
        aspp_pooling(x2, weight, gamma, beta, running_mean, running_var, hw_tile=128))
    ref2 = _reference(x2, weight, gamma, beta, running_mean, running_var)
    assert out2.shape == ref2.shape, (out2.shape, ref2.shape)
    assert jnp.allclose(out2, ref2, atol=1e-5, rtol=1e-5), "case 2 mismatch vs reference"

    print("KERNEL_OK")
</pallas_src>

<mosaic_0001>
module attributes {stable_mosaic.version = 11 : i64} {
  func.func @_aspp_pooling_kernel(%arg0: i32, %arg1: i32, %arg2: memref<1x4x128xf32, #tpu.memory_space<vmem>>, %arg3: memref<4x8xf32, #tpu.memory_space<vmem>>, %arg4: memref<1x8xf32, #tpu.memory_space<vmem>>, %arg5: memref<1x1x8xf32, #tpu.memory_space<vmem>>, %arg6: memref<1x4x128xf32, #tpu.memory_space<vmem>>) attributes {dimension_semantics = [#tpu.dimension_semantics<parallel>, #tpu.dimension_semantics<arbitrary>], iteration_bounds = array<i64: 2, 2>, scalar_prefetch = 0 : i64, scratch_operands = 1 : i64, tpu.core_type = #tpu.core_type<tc>, window_params = [{transform_indices = @transform_0, window_bounds = array<i64: 1, 4, 128>}, {pipeline_mode = #tpu.pipeline_mode<synchronous>, transform_indices = @transform_1, window_bounds = array<i64: 4, 8>}, {pipeline_mode = #tpu.pipeline_mode<synchronous>, transform_indices = @transform_2, window_bounds = array<i64: 1, 8>}, {transform_indices = @transform_3, window_bounds = array<i64: 1, 1, 8>}]} {
    %c0_i32 = arith.constant 0 : i32
    %0 = arith.cmpi eq, %arg1, %c0_i32 : i32
    %1 = arith.extui %0 : i1 to i32
    %c0_i32_0 = arith.constant 0 : i32
    %2 = arith.cmpi ne, %1, %c0_i32_0 : i32
    scf.if %2 {
      %cst = arith.constant 0.000000e+00 : f32
      %10 = vector.broadcast %cst : f32 to vector<1x4x128xf32>
      %c0_10 = arith.constant 0 : index
      %c0_11 = arith.constant 0 : index
      %c0_12 = arith.constant 0 : index
      %11 = vector.load %arg6[%c0_10, %c0_11, %c0_12] : memref<1x4x128xf32, #tpu.memory_space<vmem>>, vector<1x4x128xf32>
      tpu.vector_store %arg6[%c0_10, %c0_11, %c0_12], %10 {strides = array<i32>} : memref<1x4x128xf32, #tpu.memory_space<vmem>>, vector<1x4x128xf32>,
    } else {
    }
    %c0 = arith.constant 0 : index
    %c0_1 = arith.constant 0 : index
    %c0_2 = arith.constant 0 : index
    %3 = vector.load %arg2[%c0, %c0_1, %c0_2] : memref<1x4x128xf32, #tpu.memory_space<vmem>>, vector<1x4x128xf32>
    %c0_3 = arith.constant 0 : index
    %c0_4 = arith.constant 0 : index
    %c0_5 = arith.constant 0 : index
    %4 = vector.load %arg6[%c0_3, %c0_4, %c0_5] : memref<1x4x128xf32, #tpu.memory_space<vmem>>, vector<1x4x128xf32>
    %5 = arith.addf %4, %3 : vector<1x4x128xf32>
    %c0_6 = arith.constant 0 : index
    %c0_7 = arith.constant 0 : index
    %c0_8 = arith.constant 0 : index
    %6 = vector.load %arg6[%c0_6, %c0_7, %c0_8] : memref<1x4x128xf32, #tpu.memory_space<vmem>>, vector<1x4x128xf32>
    tpu.vector_store %arg6[%c0_6, %c0_7, %c0_8], %5 {strides = array<i32>} : memref<1x4x128xf32, #tpu.memory_space<vmem>>, vector<1x4x128xf32>,
    %c1_i32 = arith.constant 1 : i32
    %7 = arith.cmpi eq, %arg1, %c1_i32 : i32
    %8 = arith.extui %7 : i1 to i32
    %c0_i32_9 = arith.constant 0 : i32
    %9 = arith.cmpi ne, %8, %c0_i32_9 : i32
    scf.if %9 {
      %c0_10 = arith.constant 0 : index
      %c0_11 = arith.constant 0 : index
      %c0_12 = arith.constant 0 : index
      %10 = vector.load %arg6[%c0_10, %c0_11, %c0_12] : memref<1x4x128xf32, #tpu.memory_space<vmem>>, vector<1x4x128xf32>
      %cst = arith.constant dense<0.000000e+00> : vector<1x4xf32>
      %11 = vector.multi_reduction <add>, %10, %cst [2] : vector<1x4x128xf32> to vector<1x4xf32>
      %cst_13 = arith.constant 3.906250e-03 : f32
      %12 = vector.broadcast %cst_13 : f32 to vector<1x4xf32>
      %13 = arith.mulf %11, %12 : vector<1x4xf32>
      %c0_14 = arith.constant 0 : index
      %c0_15 = arith.constant 0 : index
      %14 = vector.load %arg3[%c0_14, %c0_15] : memref<4x8xf32, #tpu.memory_space<vmem>>, vector<4x8xf32>
      %cst_16 = arith.constant dense<0.000000e+00> : vector<1x8xf32>
      %15 = tpu.matmul %13, %14, %cst_16 {dimension_numbers = #tpu.dot_dimension_numbers<[1], [0], [0], [1], [0, 0, 1, 1], [], []>} : vector<1x4xf32>, vector<4x8xf32>, vector<1x8xf32> -> vector<1x8xf32>
      %c0_17 = arith.constant 0 : index
      %c0_18 = arith.constant 0 : index
      %16 = vector.load %arg4[%c0_17, %c0_18] : memref<1x8xf32, #tpu.memory_space<vmem>>, vector<1x8xf32>
      %17 = arith.addf %15, %16 : vector<1x8xf32>
      %cst_19 = arith.constant 0.000000e+00 : f32
      %18 = vector.broadcast %cst_19 : f32 to vector<1x8xf32>
      %19 = arith.maximumf %17, %18 : vector<1x8xf32>
      %20 = vector.shape_cast %19 : vector<1x8xf32> to vector<1x1x8xf32>
      %c0_20 = arith.constant 0 : index
      %c0_21 = arith.constant 0 : index
      %c0_22 = arith.constant 0 : index
      %21 = vector.load %arg5[%c0_20, %c0_21, %c0_22] : memref<1x1x8xf32, #tpu.memory_space<vmem>>, vector<1x1x8xf32>
      tpu.vector_store %arg5[%c0_20, %c0_21, %c0_22], %20 {strides = array<i32>} : memref<1x1x8xf32, #tpu.memory_space<vmem>>, vector<1x1x8xf32>,
    } else {
    }
    return
  }
  func.func @transform_0(%arg0: i32, %arg1: i32) -> (i32, i32, i32) {
    %c0_i32 = arith.constant 0 : i32
    %c0_i32_0 = arith.constant 0 : i32
    return %arg0, %c0_i32, %arg1 : i32, i32, i32
  }
  func.func @transform_1(%arg0: i32, %arg1: i32) -> (i32, i32) {
    %c0_i32 = arith.constant 0 : i32
    %c0_i32_0 = arith.constant 0 : i32
    %c0_i32_1 = arith.constant 0 : i32
    return %c0_i32, %c0_i32_0 : i32, i32
  }
  func.func @transform_2(%arg0: i32, %arg1: i32) -> (i32, i32) {
    %c0_i32 = arith.constant 0 : i32
    %c0_i32_0 = arith.constant 0 : i32
    %c0_i32_1 = arith.constant 0 : i32
    return %c0_i32, %c0_i32_0 : i32, i32
  }
  func.func @transform_3(%arg0: i32, %arg1: i32) -> (i32, i32, i32) {
    %c0_i32 = arith.constant 0 : i32
    %c0_i32_0 = arith.constant 0 : i32
    %c0_i32_1 = arith.constant 0 : i32
    return %arg0, %c0_i32, %c0_i32_0 : i32, i32, i32
  }
}

</mosaic_0001>

<llo_original>
// kernel: tpu_custom_call.1
$region0: #{tpu_custom_call.1}
  #allocation0 [shape = 'u32[]', space=smem, size = 0x4, offset = 0x4, fixed_abs, tag = 'smem constant byte address 0x4 - core index']
  #allocation1 [shape = 'u32[144,128]{1,0:T(1,128)}', space=vmem, size = 0x12000, scoped, tag = 'internal scratch']
  #allocation2 [shape = 'f32[1,4,128]{2,1,0:T(4,128)}', space=vmem, size = 0x800, scoped, tag = 'scratch operand']
  %s0 = inlined_call_operand.hbm [shape: f32[2,4,256], index: 0, kind: input, shape index: {}]
  %s1 = inlined_call_operand.hbm [shape: f32[4,8], index: 1, kind: input, shape index: {}]
  %s2 = inlined_call_operand.vmem [shape: f32[1,8], index: 2, kind: input, shape index: {}]
  %s3 = inlined_call_operand.hbm [shape: f32[2,1,8], index: 3, kind: output, shape index: {}]
  %s4 = sld [smem:[#allocation0]]
  $region61: #{tpu_custom_call.1} parent=0
    _
  %s6 = ssub.s32 1, %s4
  %s7 = scalar_select 0, %s6, %s4
  $region1: #{tpu_custom_call.1} parent=0
    #allocation3 [shape = 'u8[4096]{0}', space=vmem, size = 0x1000, scoped, tag = 'input window, operand 0']
    #allocation4 [shape = 's32[2]{0}', space=sflag, size = 0x8, scoped, tag = 'scoped memory for tpu_custom_call.1']
    #allocation5 [shape = 's32[2]{0}', space=sflag, size = 0x8, scoped, tag = 'scoped memory for tpu_custom_call.1']
    #allocation6 [shape = 'u8[2048]{0}', space=vmem, size = 0x800, scoped, tag = 'input window, operand 1, single buffered']
    #allocation7 [shape = 's32[1]{0}', space=sflag, size = 0x4, scoped, tag = 'scoped memory for tpu_custom_call.1']
    #allocation8 [shape = 'u8[1024]{0}', space=vmem, size = 0x400, scoped, tag = 'output window, operand 0']
    %8 = vsyncpa [#allocation4], 0
    %s9 = scalar_lea.sflag [#allocation4], 1
    %10 = vsyncpa %s9, 0
    %11 = vsyncpa [#allocation7], 0
    %12 = vsyncpa [#allocation5], 0
    %s13 = scalar_lea.sflag [#allocation5], 1
    %14 = vsyncpa %s13, 0
    loop: start=0, step=1, limit=6
    $region2: #{tpu_custom_call.1} parent=1 // loop_pre_header
      _
    $region3: #{tpu_custom_call.1} parent=1 // loop_header
      %s16 = sphi 0, %s20
      %p17 = scmp.ge.s32.totalorder %s16, 6
      %s23 = sphi 0, %s35
      %s24 = sphi 0, %s31
      %s25 = sphi 0, %s23
      %s26 = sphi 0, %s24
      %s27 = sphi 0, %s25
      %s28 = sphi 0, %s26
      %s40 = sphi 0, %s42
      %s43 = sphi 0, %s40
      %s44 = sphi 0, %s43
      %s60 = sphi 0, %s44
      %s64 = sphi 0, %s64
      %s66 = sphi 0, %s64
      %s67 = sphi 0, %s66
      %s81 = sphi 0, %s67
      %s85 = sphi 0, %s85
      %s87 = sphi 0, %s85
      %s88 = sphi 0, %s87
      %s102 = sphi 0, %s88
      %s108 = sphi 0, %s110
      %s111 = sphi 0, %s108
      %s112 = sphi 0, %s111
      %s128 = sphi 0, %s112
    $region4: #{tpu_custom_call.1} parent=1 // loop_header_branch
      %19 = sbr.rel (%p17) target = $region8
    $region5: #{tpu_custom_call.1} parent=1 // loop_body
      %s21 = ssub.s32 %s16, 1
      %s22 = ssub.s32 %s16, 2
      %s29 = sadd.s32 1, %s24
      %p30 = scmp.ge.s32.totalorder %s29, 2
      %s31 = scalar_select %p30, 0, %s29
      %s32 = sadd.s32 1, %s23
      %s33 = scalar_select %p30, %s32, %s23
      %p34 = scmp.ge.s32.totalorder %s33, 2
      %s35 = scalar_select %p34, 0, %s33
      %s36 = ssub.s32 %s23, %s35
      %s37 = ssub.s32 %s24, %s31
      %s38 = sor.u32 %s36, %s37
      %p39 = scmp.eq.s32.totalorder %s38, 0
      %s41 = sadd.s32 %s40, 1
      %s42 = scalar_select %p39, %s40, %s41
      %p45 = pneg %p39
      %p46 = scmp.eq.s32.totalorder %s16, 3
      %p47 = por %p45, %p46
      %p48 = scmp.ne.s32.totalorder %s40, %s43
      %p49 = scmp.eq.s32.totalorder %s16, 0
      %p50 = por %p48, %p49
      %p51 = scmp.ne.s32.totalorder %s40, %s43
      %p52 = scmp.eq.s32.totalorder %s21, 3
      %p53 = por %p51, %p52
      %p54 = scmp.ne.s32.totalorder %s43, %s44
      %p55 = scmp.eq.s32.totalorder %s21, 0
      %p56 = por %p54, %p55
      %p57 = scmp.ne.s32.totalorder %s43, %s44
      %p58 = scmp.eq.s32.totalorder %s22, 3
      %p59 = por %p57, %p58
      %p61 = scmp.ne.s32.totalorder %s44, %s60
      %p62 = scmp.eq.s32.totalorder %s22, 0
      %p63 = por %p61, %p62
      %s65 = sadd.s32 %s64, 1
      %p68 = scmp.eq.s32.totalorder %s16, 3
      %p69 = scmp.ne.s32.totalorder %s64, %s66
      %p70 = scmp.eq.s32.totalorder %s16, 0
      %p71 = por %p69, %p70
      %p72 = scmp.ne.s32.totalorder %s64, %s66
      %p73 = scmp.eq.s32.totalorder %s21, 3
      %p74 = por %p72, %p73
      %p75 = scmp.ne.s32.totalorder %s66, %s67
      %p76 = scmp.eq.s32.totalorder %s21, 0
      %p77 = por %p75, %p76
      %p78 = scmp.ne.s32.totalorder %s66, %s67
      %p79 = scmp.eq.s32.totalorder %s22, 3
      %p80 = por %p78, %p79
      %p82 = scmp.ne.s32.totalorder %s67, %s81
      %p83 = scmp.eq.s32.totalorder %s22, 0
      %p84 = por %p82, %p83
      %s86 = sadd.s32 %s85, 1
      %p89 = scmp.eq.s32.totalorder %s16, 3
      %p90 = scmp.ne.s32.totalorder %s85, %s87
      %p91 = scmp.eq.s32.totalorder %s16, 0
      %p92 = por %p90, %p91
      %p93 = scmp.ne.s32.totalorder %s85, %s87
      %p94 = scmp.eq.s32.totalorder %s21, 3
      %p95 = por %p93, %p94
      %p96 = scmp.ne.s32.totalorder %s87, %s88
      %p97 = scmp.eq.s32.totalorder %s21, 0
      %p98 = por %p96, %p97
      %p99 = scmp.ne.s32.totalorder %s87, %s88
      %p100 = scmp.eq.s32.totalorder %s22, 3
      %p101 = por %p99, %p100
      %p103 = scmp.ne.s32.totalorder %s88, %s102
      %p104 = scmp.eq.s32.totalorder %s22, 0
      %p105 = por %p103, %p104
      %s106 = ssub.s32 %s23, %s35
      %p107 = scmp.eq.s32.totalorder %s106, 0
      %s109 = sadd.s32 %s108, 1
      %s110 = scalar_select %p107, %s108, %s109
      %p113 = pneg %p107
      %p114 = scmp.eq.s32.totalorder %s16, 3
      %p115 = por %p113, %p114
      %p116 = scmp.ne.s32.totalorder %s108, %s111
      %p117 = scmp.eq.s32.totalorder %s16, 0
      %p118 = por %p116, %p117
      %p119 = scmp.ne.s32.totalorder %s108, %s111
      %p120 = scmp.eq.s32.totalorder %s21, 3
      %p121 = por %p119, %p120
      %p122 = scmp.ne.s32.totalorder %s111, %s112
      %p123 = scmp.eq.s32.totalorder %s21, 0
      %p124 = por %p122, %p123
      %p125 = scmp.ne.s32.totalorder %s111, %s112
      %p126 = scmp.eq.s32.totalorder %s22, 3
      %p127 = por %p125, %p126
      %p129 = scmp.ne.s32.totalorder %s112, %s128
      %p130 = scmp.eq.s32.totalorder %s22, 0
      %p131 = por %p129, %p130
      %p132 = scmp.le.s32.totalorder 1, %s16
      %p133 = scmp.lt.s32.totalorder %s16, 5
      %p134 = pnand %p132, %p133
      %p135 = pneg %p134
      // Predicated region
      $region9: #{tpu_custom_call.1} parent=5 // pred_check
        _
      $region10: #{tpu_custom_call.1} parent=5 // pred_check_branch
        %137 = sbr.rel (%p134) target = $region12
      $region11: #{tpu_custom_call.1} parent=5 // pred_region
        %s138 = ssub.s32 %s16, 1
        // Predicated region
        $region13: #{tpu_custom_call.1} parent=11 // pred_check
          %p139 = pneg %p77
        $region14: #{tpu_custom_call.1} parent=11 // pred_check_branch
          %141 = sbr.rel (%p139) target = $region16
        $region15: #{tpu_custom_call.1} parent=11 // pred_region
          %s143 = ssub.s32 64, 64
          %144 = vsyncadd [#allocation7], %s143
          %s146 = sshll.u32 [#allocation6], 4
          %s147 = int_to_ptr.vmem [resolvable:$true] %s146
          %149 = dma.hbm_to_vmem [thread:$0]  %s1, 64, %s147, [#allocation7]
        $region16: #{tpu_custom_call.1} parent=11 // pred_fallthru
          _
        // Predicated region
        $region17: #{tpu_custom_call.1} parent=11 // pred_check
          %p150 = pneg %p98
        $region18: #{tpu_custom_call.1} parent=11 // pred_check_branch
          %152 = sbr.rel (%p150) target = $region20
        $region19: #{tpu_custom_call.1} parent=11 // pred_region
          _
        $region20: #{tpu_custom_call.1} parent=11 // pred_fallthru
          _
      $region12: #{tpu_custom_call.1} parent=5 // pred_fallthru
        _
      %p153 = scmp.lt.s32.totalorder %s16, 4
      // Predicated region
      $region21: #{tpu_custom_call.1} parent=5 // pred_check
        %p154 = pneg %p153
      $region22: #{tpu_custom_call.1} parent=5 // pred_check_branch
        %156 = sbr.rel (%p154) target = $region24
      $region23: #{tpu_custom_call.1} parent=5 // pred_region
        // Predicated region
        $region25: #{tpu_custom_call.1} parent=23 // pred_check
          %p157 = pneg %p50
        $region26: #{tpu_custom_call.1} parent=23 // pred_check_branch
          %159 = sbr.rel (%p157) target = $region28
        $region27: #{tpu_custom_call.1} parent=23 // pred_region
          %s160 = sand.u32 %s40, 1
          %s161 = scalar_lea.sflag [#allocation4], %s160
          %s162 = sand.u32 %s40, 1
          %s163 = smul.addr %s162, 4
          %s164 = scalar_lea.vmem [#allocation3], %s163
          %s166 = ssub.s32 64, 64
          %167 = vsyncadd %s161, %s166
          %s168 = smul.addr %s23, 2
          %s169 = sadd.s32 %s24, %s168
          %s170 = smul.addr %s169, 64
          %s171 = scalar_lea.hbm %s0, %s170
          %s173 = sshll.u32 %s164, 4
          %s174 = int_to_ptr.vmem [resolvable:$true] %s173
          %176 = dma.hbm_to_vmem [thread:$0]  %s171, 64, %s174, %s161
        $region28: #{tpu_custom_call.1} parent=23 // pred_fallthru
          _
      $region24: #{tpu_custom_call.1} parent=5 // pred_fallthru
        _
      %p177 = scmp.le.s32.totalorder 1, %s16
      %p178 = scmp.lt.s32.totalorder %s16, 5
      %p179 = pnand %p177, %p178
      %p180 = pneg %p179
      // Predicated region
      $region29: #{tpu_custom_call.1} parent=5 // pred_check
        _
      $region30: #{tpu_custom_call.1} parent=5 // pred_check_branch
        %182 = sbr.rel (%p179) target = $region32
      $region31: #{tpu_custom_call.1} parent=5 // pred_region
        %s183 = ssub.s32 %s16, 1
        %s184 = sand.u32 %s43, 1
        %s185 = scalar_lea.sflag [#allocation4], %s184
        %s186 = sand.u32 %s43, 1
        %s187 = smul.addr %s186, 4
        %s188 = scalar_lea.vmem [#allocation3], %s187
        // Predicated region
        $region33: #{tpu_custom_call.1} parent=31 // pred_check
          %p189 = pneg %p56
        $region34: #{tpu_custom_call.1} parent=31 // pred_check_branch
          %191 = sbr.rel (%p189) target = $region36
        $region35: #{tpu_custom_call.1} parent=31 // pred_region
          %192 = dma.done %s185, 64
        $region36: #{tpu_custom_call.1} parent=31 // pred_fallthru
          _
        // Predicated region
        $region37: #{tpu_custom_call.1} parent=31 // pred_check
          %p193 = pneg %p77
        $region38: #{tpu_custom_call.1} parent=31 // pred_check_branch
          %195 = sbr.rel (%p193) target = $region40
        $region39: #{tpu_custom_call.1} parent=31 // pred_region
          %196 = dma.done [#allocation7], 64
        $region40: #{tpu_custom_call.1} parent=31 // pred_fallthru
          _
        %s197 = sand.u32 %s43, 1
        %s198 = scalar_lea.sflag [#allocation4], %s197
        %s199 = sand.u32 %s43, 1
        %s200 = smul.addr %s199, 4
        %s201 = scalar_lea.vmem [#allocation3], %s200
        %p202 = pneg %p56
        %p203 = pneg %p53
        %p204 = pneg %p77
        %p205 = pneg %p74
        %p206 = pneg %p98
        %p207 = pneg %p95
        %p208 = pneg %p124
        %p209 = pneg %p121
        %s210 = sand.u32 %s111, 1
        %s211 = scalar_lea.sflag [#allocation5], %s210
        %s212 = sand.u32 %s111, 1
        %s213 = scalar_lea.vmem [#allocation8], %s212
        %p214 = scmp.eq.s32.totalorder %s26, 0
        // Predicated region
        $region41: #{tpu_custom_call.1} parent=31 // pred_check
          %p215 = pneg %p214
        $region42: #{tpu_custom_call.1} parent=31 // pred_check_branch
          %217 = sbr.rel (%p215) target = $region44
        $region43: #{tpu_custom_call.1} parent=31 // pred_region
          %218 = vst [vmem:[#allocation2] sm:$0xf] 0.0
        $region44: #{tpu_custom_call.1} parent=31 // pred_fallthru
          _
        %v219 = vld [vmem:[%s188] sm:$0xf]
        %v220 = vld [vmem:[#allocation2] sm:$0xf]
        %v221 = vadd.f32 %v220, %v219
        %222 = vst [vmem:[#allocation2] sm:$0xf] %v221
        %p223 = scmp.eq.s32.totalorder %s26, 1
        // Predicated region
        $region45: #{tpu_custom_call.1} parent=31 // pred_check
          %p224 = pneg %p223
        $region46: #{tpu_custom_call.1} parent=31 // pred_check_branch
          %226 = sbr.rel (%p224) target = $region48
        $region47: #{tpu_custom_call.1} parent=31 // pred_region
          %v227 = vld [vmem:[#allocation2] sm:$0xf]
          %vm228 = vcmask 1043456
          %v229 = vsel %vm228, %v227, 0.0
          %230 = vadd.xlane.f32.xlu0 %v229
          %v231 = vpop.xlane.xlu0 %230
          %v232 = vmul.f32 %v231, 0.00390625
          %v233 = vld [vmem:[#allocation6] sm:$0xf]
          %v234 = vld [vmem:[%s2] sm:$0x1]
          %v236 = vlaneseq
          %v237 = vand.u32 %v236, 127
          %v238 = vlaneseq
          %v239 = vshrl.u32 %v238, 7
          %v240 = vsub.s32 %v237, %v239
          %v241 = vrot.slane %v232, %v240
          %vm242 = vcmask 31744
          %v243 = vsel %vm242, %v241, 0
          %v246 = vsel %vm228, %v233, 0
          %248 = vmatprep.subr.mxu0 0.0
          %249 = vmatpush1.msra.mxu0 %v246
          %250 = vmatprep.subr.mxu0 0.0
          %251 = vmatpush1.msra.mxu0 0.0
          %252 = vmatprep.subr.mxu0 0.0
          %253 = vmatpush1.msra.mxu0 0.0
          %254 = vmatprep.subr.mxu0 0.0
          %255 = vmatpush1.msra.mxu0 0.0
          %256 = vmatprep.subr.mxu0 0.0
          %257 = vmatpush1.msra.mxu0 0.0
          %258 = vmatprep.subr.mxu0 0.0
          %259 = vmatpush1.msra.mxu0 0.0
          %260 = vmatprep.subr.mxu0 0.0
          %261 = vmatpush1.msra.mxu0 0.0
          %262 = vmatprep.subr.mxu0 0.0
          %263 = vmatpush1.msra.mxu0 0.0
          %264 = vmatprep.subr.mxu0 0.0
          %265 = vmatpush1.msra.mxu0 0.0
          %266 = vmatprep.subr.mxu0 0.0
          %267 = vmatpush1.msra.mxu0 0.0
          %268 = vmatprep.subr.mxu0 0.0
          %269 = vmatpush1.msra.mxu0 0.0
          %270 = vmatprep.subr.mxu0 0.0
          %271 = vmatpush1.msra.mxu0 0.0
          %272 = vmatprep.subr.mxu0 0.0
          %273 = vmatpush1.msra.mxu0 0.0
          %274 = vmatprep.subr.mxu0 0.0
          %275 = vmatpush1.msra.mxu0 0.0
          %276 = vmatprep.subr.mxu0 0.0
          %277 = vmatpush1.msra.mxu0 0.0
          %278 = vmatprep.subr.mxu0 0.0
          %279 = vmatpush1.msra.mxu0 0.0
          %280 = vmatprep.subr.mxu0 0.0
          %281 = vmatpush1.msra.mxu0 0.0
          %282 = vmatprep.subr.mxu0 0.0
          %283 = vmatpush1.msra.mxu0 0.0
          %284 = vmatprep.subr.mxu0 0.0
          %285 = vmatpush1.msra.mxu0 0.0
          %286 = vmatprep.subr.mxu0 0.0
          %287 = vmatpush1.msra.mxu0 0.0
          %288 = vmatprep.subr.mxu0 0.0
          %289 = vmatpush1.msra.mxu0 0.0
          %290 = vmatprep.subr.mxu0 0.0
          %291 = vmatpush1.msra.mxu0 0.0
          %292 = vmatprep.subr.mxu0 0.0
          %293 = vmatpush1.msra.mxu0 0.0
          %294 = vmatprep.subr.mxu0 0.0
          %295 = vmatpush1.msra.mxu0 0.0
          %296 = vmatprep.subr.mxu0 0.0
          %297 = vmatpush1.msra.mxu0 0.0
          %298 = vmatprep.subr.mxu0 0.0
          %299 = vmatpush1.msra.mxu0 0.0
          %300 = vmatprep.subr.mxu0 0.0
          %301 = vmatpush1.msra.mxu0 0.0
          %302 = vmatprep.subr.mxu0 0.0
          %303 = vmatpush1.msra.mxu0 0.0
          %304 = vmatprep.subr.mxu0 0.0
          %305 = vmatpush1.msra.mxu0 0.0
          %306 = vmatprep.subr.mxu0 0.0
          %307 = vmatpush1.msra.mxu0 0.0
          %308 = vmatprep.subr.mxu0 0.0
          %309 = vmatpush1.msra.mxu0 0.0
          %310 = vmatprep.subr.mxu0 0.0
          %311 = vmatpush1.msra.mxu0 0.0
          %312 = vmatprep.mubr.f32.mxu0 0.0
          %313 = vmatmul.mubr.f32.gmra.mrb[0].mxu0 %v243
          %v314 = vpop.f32.mrb[0].mxu0
          %v315 = vadd.f32 %v234, %v314
          %v316 = vpop.f32.mrb[0].mxu0
          %317 = vdwg.mxu0
          %v318 = vmax.f32 %v315, 0.0
          %vm319 = vcmask 57344
          %320 = vst.msk [vmem:[%s213] sm:$0x1] %vm319, %v318
        $region48: #{tpu_custom_call.1} parent=31 // pred_fallthru
          _
        %s321 = sand.u32 %s111, 1
        %s322 = scalar_lea.sflag [#allocation5], %s321
        %s323 = sand.u32 %s111, 1
        %s324 = scalar_lea.vmem [#allocation8], %s323
        // Predicated region
        $region49: #{tpu_custom_call.1} parent=31 // pred_check
          %p325 = pneg %p121
        $region50: #{tpu_custom_call.1} parent=31 // pred_check_branch
          %327 = sbr.rel (%p325) target = $region52
        $region51: #{tpu_custom_call.1} parent=31 // pred_region
          %s329 = ssub.s32 16, 16
          %330 = vsyncadd %s322, %s329
          %s331 = smul.addr %s25, 16
          %s332 = scalar_lea.hbm %s3, %s331
          %s334 = sshll.u32 %s324, 4
          %s335 = int_to_ptr.vmem [resolvable:$true] %s334
          %337 = dma.vmem_to_hbm [thread:$0]  %s335, 16, %s332, %s322
        $region52: #{tpu_custom_call.1} parent=31 // pred_fallthru
          _
      $region32: #{tpu_custom_call.1} parent=5 // pred_fallthru
        _
      %p338 = scmp.le.s32.totalorder 2, %s16
      // Predicated region
      $region53: #{tpu_custom_call.1} parent=5 // pred_check
        %p339 = pneg %p338
      $region54: #{tpu_custom_call.1} parent=5 // pred_check_branch
        %341 = sbr.rel (%p339) target = $region56
      $region55: #{tpu_custom_call.1} parent=5 // pred_region
        %s342 = ssub.s32 %s16, 2
        // Predicated region
        $region57: #{tpu_custom_call.1} parent=55 // pred_check
          %p343 = pneg %p127
        $region58: #{tpu_custom_call.1} parent=55 // pred_check_branch
          %345 = sbr.rel (%p343) target = $region60
        $region59: #{tpu_custom_call.1} parent=55 // pred_region
          %s346 = sand.u32 %s112, 1
          %s347 = scalar_lea.sflag [#allocation5], %s346
          %s348 = sand.u32 %s112, 1
          %s349 = scalar_lea.vmem [#allocation8], %s348
          %350 = dma.done %s347, 16
        $region60: #{tpu_custom_call.1} parent=55 // pred_fallthru
          _
      $region56: #{tpu_custom_call.1} parent=5 // pred_fallthru
        _
    $region6: #{tpu_custom_call.1} parent=1 // loop_footer
      %s20 = sadd.s32 1, %s16
    $region7: #{tpu_custom_call.1} parent=1 // loop_footer_branch
      %15 = sbr.rel target = $region3
    $region8: #{tpu_custom_call.1} parent=1 // loop_exit
      _
    %351 = vsyncpa [#allocation4], 1
    %s352 = scalar_lea.sflag [#allocation4], 1
    %353 = vsyncpa %s352, 1
    %354 = vsyncpa [#allocation7], 1
    %355 = vsyncpa [#allocation5], 1
    %s356 = scalar_lea.sflag [#allocation5], 1
    %357 = vsyncpa %s356, 1

</llo_original>
